<compile_context>
chip_gen: v5e
topology: v5e:2x2
jax: 0.10.0
libtpu: 0.0.40
codegen_flags: <defaults>
</compile_context>

<pallas_src>
import math

import jax
import jax.numpy as jnp
from jax import lax
from jax.experimental import pallas as pl
from jax.experimental.pallas import tpu as pltpu


def _bayes_linear_kernel(x_ref, wmu_ref, wls_ref, weps_ref,
                         bmu_ref, bls_ref, beps_ref, o_ref, acc_ref):
    k = pl.program_id(2)

    @pl.when(k == 0)
    def _():
        acc_ref[...] = jnp.zeros_like(acc_ref)

    # Reparameterized weight tile, PyTorch layout (tn, tk); keep it as a value
    # (never stored to scratch) so the store slot stays free for output writeback.
    w = wmu_ref[...] + jnp.exp(wls_ref[...]) * weps_ref[...]

    # x tile (tm, tk) contracted against w tile (tn, tk) on the last dims:
    # equivalent to x @ w.T without any physical transpose.
    acc_ref[...] += lax.dot_general(
        x_ref[...], w,
        dimension_numbers=(((1,), (1,)), ((), ())),
        preferred_element_type=jnp.float32)

    @pl.when(k == pl.num_programs(2) - 1)
    def _():
        # Bias reparam + add only once per output tile (finalize branch).
        b = bmu_ref[...] + jnp.exp(bls_ref[...]) * beps_ref[...]   # (1, tn)
        o_ref[...] = (acc_ref[...] + b).astype(o_ref.dtype)


def _round_up(x, m):
    return ((x + m - 1) // m) * m


def bayes_linear_forward(x, weight_mu, weight_log_sigma, weight_eps,
                         bias_mu, bias_log_sigma, bias_eps):
    """x: (B, in_f); weight_*: (out_f, in_f); bias_*: (out_f,). Returns (B, out_f)."""
    B, in_f = x.shape
    out_f, _ = weight_mu.shape

    # ---- tile sizes (lane-dense, conservative for v7x's 32 MiB scoped VMEM) ----
    tm = min(256, _round_up(B, 8))
    tn = min(512, _round_up(out_f, 128))
    tk = min(512, _round_up(in_f, 128))

    Mp = _round_up(B, tm)
    Np = _round_up(out_f, tn)
    Kp = _round_up(in_f, tk)

    # ---- zero-pad to tile multiples (padded eps/mu are 0 -> padded w is 0,
    #      padded x columns are 0 -> zero contribution; padded outputs sliced off).
    f32 = jnp.float32
    xp   = jnp.zeros((Mp, Kp), f32).at[:B, :in_f].set(x.astype(f32))
    wmup = jnp.zeros((Np, Kp), f32).at[:out_f, :in_f].set(weight_mu.astype(f32))
    wlsp = jnp.zeros((Np, Kp), f32).at[:out_f, :in_f].set(weight_log_sigma.astype(f32))
    wepp = jnp.zeros((Np, Kp), f32).at[:out_f, :in_f].set(weight_eps.astype(f32))
    bmup = jnp.zeros((1, Np), f32).at[0, :out_f].set(bias_mu.astype(f32))
    blsp = jnp.zeros((1, Np), f32).at[0, :out_f].set(bias_log_sigma.astype(f32))
    bepp = jnp.zeros((1, Np), f32).at[0, :out_f].set(bias_eps.astype(f32))

    grid = (Mp // tm, Np // tn, Kp // tk)

    out_pad = pl.pallas_call(
        _bayes_linear_kernel,
        out_shape=jax.ShapeDtypeStruct((Mp, Np), x.dtype),
        grid_spec=pltpu.PrefetchScalarGridSpec(
            num_scalar_prefetch=0,
            grid=grid,
            in_specs=[
                pl.BlockSpec((tm, tk), lambda i, j, k: (i, k)),   # x
                pl.BlockSpec((tn, tk), lambda i, j, k: (j, k)),   # weight_mu
                pl.BlockSpec((tn, tk), lambda i, j, k: (j, k)),   # weight_log_sigma
                pl.BlockSpec((tn, tk), lambda i, j, k: (j, k)),   # weight_eps
                pl.BlockSpec((1, tn), lambda i, j, k: (0, j)),    # bias_mu
                pl.BlockSpec((1, tn), lambda i, j, k: (0, j)),    # bias_log_sigma
                pl.BlockSpec((1, tn), lambda i, j, k: (0, j)),    # bias_eps
            ],
            out_specs=pl.BlockSpec((tm, tn), lambda i, j, k: (i, j)),
            scratch_shapes=[pltpu.VMEM((tm, tn), jnp.float32)],
        ),
        compiler_params=pltpu.CompilerParams(
            dimension_semantics=("parallel", "parallel", "arbitrary"),
            vmem_limit_bytes=32 * 1024 * 1024,
        ),
    )(xp, wmup, wlsp, wepp, bmup, blsp, bepp)

    return out_pad[:B, :out_f]


if __name__ == "__main__":
    # Module hyperparameters (synthetic, deterministic init — no checkpoint).
    prior_mu = 0.0
    prior_sigma = 0.1
    in_features = 32
    out_features = 16
    batch = 8

    key = jax.random.PRNGKey(0)
    k_x, k_wmu, k_bmu, k_weps, k_beps = jax.random.split(key, 5)

    stdv = 1.0 / math.sqrt(in_features)
    prior_log_sigma = math.log(prior_sigma)

    # Parameters (mirrors reset_parameters()).
    weight_mu = jax.random.uniform(
        k_wmu, (out_features, in_features), jnp.float32, -stdv, stdv)
    weight_log_sigma = jnp.full((out_features, in_features), prior_log_sigma,
                                dtype=jnp.float32)
    bias_mu = jax.random.uniform(k_bmu, (out_features,), jnp.float32, -stdv, stdv)
    bias_log_sigma = jnp.full((out_features,), prior_log_sigma, dtype=jnp.float32)

    # Unfrozen path: fresh standard-normal eps (torch.randn_like equivalent),
    # drawn in JAX glue so the kernel is deterministic w.r.t. the PRNG key.
    weight_eps = jax.random.normal(k_weps, (out_features, in_features), jnp.float32)
    bias_eps = jax.random.normal(k_beps, (out_features,), jnp.float32)

    # Input.
    x = jax.random.normal(k_x, (batch, in_features), jnp.float32)

    out = bayes_linear_forward(x, weight_mu, weight_log_sigma, weight_eps,
                               bias_mu, bias_log_sigma, bias_eps)
    out = jax.block_until_ready(out)

    # Reference check in plain JAX (same eps), to validate kernel semantics.
    w_ref = weight_mu + jnp.exp(weight_log_sigma) * weight_eps
    b_ref = bias_mu + jnp.exp(bias_log_sigma) * bias_eps
    ref = x @ w_ref.T + b_ref
    assert out.shape == (batch, out_features)
    assert jnp.allclose(out, ref, atol=1e-5, rtol=1e-5)

    print("KERNEL_OK")
</pallas_src>

<mosaic_0001>
module attributes {stable_mosaic.version = 11 : i64} {
  func.func @_bayes_linear_kernel(%arg0: i32, %arg1: i32, %arg2: i32, %arg3: memref<8x128xf32, #tpu.memory_space<vmem>>, %arg4: memref<128x128xf32, #tpu.memory_space<vmem>>, %arg5: memref<128x128xf32, #tpu.memory_space<vmem>>, %arg6: memref<128x128xf32, #tpu.memory_space<vmem>>, %arg7: memref<1x128xf32, #tpu.memory_space<vmem>>, %arg8: memref<1x128xf32, #tpu.memory_space<vmem>>, %arg9: memref<1x128xf32, #tpu.memory_space<vmem>>, %arg10: memref<8x128xf32, #tpu.memory_space<vmem>>, %arg11: memref<8x128xf32, #tpu.memory_space<vmem>>) attributes {dimension_semantics = [#tpu.dimension_semantics<parallel>, #tpu.dimension_semantics<parallel>, #tpu.dimension_semantics<arbitrary>], iteration_bounds = array<i64: 1, 1, 1>, scalar_prefetch = 0 : i64, scratch_operands = 1 : i64, tpu.core_type = #tpu.core_type<tc>, window_params = [{transform_indices = @transform_0, window_bounds = array<i64: 8, 128>}, {transform_indices = @transform_1, window_bounds = array<i64: 128, 128>}, {transform_indices = @transform_2, window_bounds = array<i64: 128, 128>}, {transform_indices = @transform_3, window_bounds = array<i64: 128, 128>}, {transform_indices = @transform_4, window_bounds = array<i64: 1, 128>}, {transform_indices = @transform_5, window_bounds = array<i64: 1, 128>}, {transform_indices = @transform_6, window_bounds = array<i64: 1, 128>}, {transform_indices = @transform_7, window_bounds = array<i64: 8, 128>}]} {
    %c0_i32 = arith.constant 0 : i32
    %0 = arith.cmpi eq, %arg2, %c0_i32 : i32
    %1 = arith.extui %0 : i1 to i32
    %c0_i32_0 = arith.constant 0 : i32
    %2 = arith.cmpi ne, %1, %c0_i32_0 : i32
    scf.if %2 {
      %cst_14 = arith.constant 0.000000e+00 : f32
      %17 = vector.broadcast %cst_14 : f32 to vector<8x128xf32>
      %c0_15 = arith.constant 0 : index
      %c0_16 = arith.constant 0 : index
      %18 = vector.load %arg11[%c0_15, %c0_16] : memref<8x128xf32, #tpu.memory_space<vmem>>, vector<8x128xf32>
      tpu.vector_store %arg11[%c0_15, %c0_16], %17 {strides = array<i32>} : memref<8x128xf32, #tpu.memory_space<vmem>>, vector<8x128xf32>,
    } else {
    }
    %c0 = arith.constant 0 : index
    %c0_1 = arith.constant 0 : index
    %3 = vector.load %arg4[%c0, %c0_1] : memref<128x128xf32, #tpu.memory_space<vmem>>, vector<128x128xf32>
    %c0_2 = arith.constant 0 : index
    %c0_3 = arith.constant 0 : index
    %4 = vector.load %arg5[%c0_2, %c0_3] : memref<128x128xf32, #tpu.memory_space<vmem>>, vector<128x128xf32>
    %5 = math.exp %4 : vector<128x128xf32>
    %c0_4 = arith.constant 0 : index
    %c0_5 = arith.constant 0 : index
    %6 = vector.load %arg6[%c0_4, %c0_5] : memref<128x128xf32, #tpu.memory_space<vmem>>, vector<128x128xf32>
    %7 = arith.mulf %5, %6 : vector<128x128xf32>
    %8 = arith.addf %3, %7 : vector<128x128xf32>
    %c0_6 = arith.constant 0 : index
    %c0_7 = arith.constant 0 : index
    %9 = vector.load %arg11[%c0_6, %c0_7] : memref<8x128xf32, #tpu.memory_space<vmem>>, vector<8x128xf32>
    %c0_8 = arith.constant 0 : index
    %c0_9 = arith.constant 0 : index
    %10 = vector.load %arg3[%c0_8, %c0_9] : memref<8x128xf32, #tpu.memory_space<vmem>>, vector<8x128xf32>
    %cst = arith.constant dense<0.000000e+00> : vector<8x128xf32>
    %11 = tpu.matmul %10, %8, %cst {dimension_numbers = #tpu.dot_dimension_numbers<[1], [1], [0], [0], [0, 0, 1, 0], [], []>} : vector<8x128xf32>, vector<128x128xf32>, vector<8x128xf32> -> vector<8x128xf32>
    %12 = arith.addf %9, %11 : vector<8x128xf32>
    %c0_10 = arith.constant 0 : index
    %c0_11 = arith.constant 0 : index
    %13 = vector.load %arg11[%c0_10, %c0_11] : memref<8x128xf32, #tpu.memory_space<vmem>>, vector<8x128xf32>
    tpu.vector_store %arg11[%c0_10, %c0_11], %12 {strides = array<i32>} : memref<8x128xf32, #tpu.memory_space<vmem>>, vector<8x128xf32>,
    %c0_i32_12 = arith.constant 0 : i32
    %14 = arith.cmpi eq, %arg2, %c0_i32_12 : i32
    %15 = arith.extui %14 : i1 to i32
    %c0_i32_13 = arith.constant 0 : i32
    %16 = arith.cmpi ne, %15, %c0_i32_13 : i32
    scf.if %16 {
      %c0_14 = arith.constant 0 : index
      %c0_15 = arith.constant 0 : index
      %17 = vector.load %arg7[%c0_14, %c0_15] : memref<1x128xf32, #tpu.memory_space<vmem>>, vector<1x128xf32>
      %c0_16 = arith.constant 0 : index
      %c0_17 = arith.constant 0 : index
      %18 = vector.load %arg8[%c0_16, %c0_17] : memref<1x128xf32, #tpu.memory_space<vmem>>, vector<1x128xf32>
      %19 = math.exp %18 : vector<1x128xf32>
      %c0_18 = arith.constant 0 : index
      %c0_19 = arith.constant 0 : index
      %20 = vector.load %arg9[%c0_18, %c0_19] : memref<1x128xf32, #tpu.memory_space<vmem>>, vector<1x128xf32>
      %21 = arith.mulf %19, %20 : vector<1x128xf32>
      %22 = arith.addf %17, %21 : vector<1x128xf32>
      %c0_20 = arith.constant 0 : index
      %c0_21 = arith.constant 0 : index
      %23 = vector.load %arg11[%c0_20, %c0_21] : memref<8x128xf32, #tpu.memory_space<vmem>>, vector<8x128xf32>
      %24 = vector.broadcast %22 : vector<1x128xf32> to vector<8x128xf32>
      %25 = arith.addf %23, %24 : vector<8x128xf32>
      %c0_22 = arith.constant 0 : index
      %c0_23 = arith.constant 0 : index
      %26 = vector.load %arg10[%c0_22, %c0_23] : memref<8x128xf32, #tpu.memory_space<vmem>>, vector<8x128xf32>
      tpu.vector_store %arg10[%c0_22, %c0_23], %25 {strides = array<i32>} : memref<8x128xf32, #tpu.memory_space<vmem>>, vector<8x128xf32>,
    } else {
    }
    return
  }
  func.func @transform_0(%arg0: i32, %arg1: i32, %arg2: i32) -> (i32, i32) {
    %c0_i32 = arith.constant 0 : i32
    return %arg0, %arg2 : i32, i32
  }
  func.func @transform_1(%arg0: i32, %arg1: i32, %arg2: i32) -> (i32, i32) {
    %c0_i32 = arith.constant 0 : i32
    return %arg1, %arg2 : i32, i32
  }
  func.func @transform_2(%arg0: i32, %arg1: i32, %arg2: i32) -> (i32, i32) {
    %c0_i32 = arith.constant 0 : i32
    return %arg1, %arg2 : i32, i32
  }
  func.func @transform_3(%arg0: i32, %arg1: i32, %arg2: i32) -> (i32, i32) {
    %c0_i32 = arith.constant 0 : i32
    return %arg1, %arg2 : i32, i32
  }
  func.func @transform_4(%arg0: i32, %arg1: i32, %arg2: i32) -> (i32, i32) {
    %c0_i32 = arith.constant 0 : i32
    %c0_i32_0 = arith.constant 0 : i32
    return %c0_i32, %arg1 : i32, i32
  }
  func.func @transform_5(%arg0: i32, %arg1: i32, %arg2: i32) -> (i32, i32) {
    %c0_i32 = arith.constant 0 : i32
    %c0_i32_0 = arith.constant 0 : i32
    return %c0_i32, %arg1 : i32, i32
  }
  func.func @transform_6(%arg0: i32, %arg1: i32, %arg2: i32) -> (i32, i32) {
    %c0_i32 = arith.constant 0 : i32
    %c0_i32_0 = arith.constant 0 : i32
    return %c0_i32, %arg1 : i32, i32
  }
  func.func @transform_7(%arg0: i32, %arg1: i32, %arg2: i32) -> (i32, i32) {
    %c0_i32 = arith.constant 0 : i32
    return %arg0, %arg1 : i32, i32
  }
}

</mosaic_0001>

<llo_original>
// kernel: tpu_custom_call.1
$region0: #{tpu_custom_call.1}
  #allocation0 [shape = 'u32[]', space=smem, size = 0x4, offset = 0x4, fixed_abs, tag = 'smem constant byte address 0x4 - core index']
  #allocation1 [shape = 'u32[72,128]{1,0:T(1,128)}', space=vmem, size = 0x9000, scoped, tag = 'internal scratch']
  #allocation2 [shape = 'f32[8,128]{1,0:T(8,128)}', space=vmem, size = 0x1000, scoped, tag = 'scratch operand']
  %s0 = inlined_call_operand.hbm [shape: f32[8,128], index: 0, kind: input, shape index: {}]
  %s1 = inlined_call_operand.hbm [shape: f32[128,128], index: 1, kind: input, shape index: {}]
  %s2 = inlined_call_operand.hbm [shape: f32[128,128], index: 2, kind: input, shape index: {}]
  %s3 = inlined_call_operand.hbm [shape: f32[128,128], index: 3, kind: input, shape index: {}]
  %s4 = inlined_call_operand.vmem [shape: f32[1,128], index: 4, kind: input, shape index: {}]
  %s5 = inlined_call_operand.vmem [shape: f32[1,128], index: 5, kind: input, shape index: {}]
  %s6 = inlined_call_operand.vmem [shape: f32[1,128], index: 6, kind: input, shape index: {}]
  %s7 = inlined_call_operand.hbm [shape: f32[8,128], index: 7, kind: output, shape index: {}]
  %s8 = sld [smem:[#allocation0]]
  $region62: #{tpu_custom_call.1} parent=0
    _
  %s10 = ssub.s32 1, %s8
  %s11 = scalar_select 0, %s10, %s8
  $region1: #{tpu_custom_call.1} parent=0
    #allocation3 [shape = 'u8[4096]{0}', space=vmem, size = 0x1000, scoped, tag = 'input window, operand 0, single buffered']
    #allocation4 [shape = 's32[1]{0}', space=sflag, size = 0x4, scoped, tag = 'scoped memory for tpu_custom_call.1']
    #allocation5 [shape = 's32[1]{0}', space=sflag, size = 0x4, scoped, tag = 'scoped memory for tpu_custom_call.1']
    #allocation6 [shape = 'u8[65536]{0}', space=vmem, size = 0x10000, scoped, tag = 'input window, operand 1, single buffered']
    #allocation7 [shape = 's32[1]{0}', space=sflag, size = 0x4, scoped, tag = 'scoped memory for tpu_custom_call.1']
    #allocation8 [shape = 'u8[65536]{0}', space=vmem, size = 0x10000, scoped, tag = 'input window, operand 2, single buffered']
    #allocation9 [shape = 'u8[65536]{0}', space=vmem, size = 0x10000, scoped, tag = 'input window, operand 3, single buffered']
    #allocation10 [shape = 's32[1]{0}', space=sflag, size = 0x4, scoped, tag = 'scoped memory for tpu_custom_call.1']
    #allocation11 [shape = 'u8[4096]{0}', space=vmem, size = 0x1000, scoped, tag = 'output window, operand 0, single buffered']
    %12 = vsyncpa [#allocation4], 0
    %13 = vsyncpa [#allocation7], 0
    %14 = vsyncpa [#allocation10], 0
    %15 = vsyncpa [#allocation5], 0
    // Predicated region
    $region2: #{tpu_custom_call.1} parent=1 // pred_check
      _
    $region3: #{tpu_custom_call.1} parent=1 // pred_check_branch
      %17 = sbr.rel (0) target = $region5
    $region4: #{tpu_custom_call.1} parent=1 // pred_region
      %19 = vsyncadd [#allocation4], 0
      %s21 = sshll.u32 %s0, 4
      %s22 = int_to_ptr.hbm [resolvable:$true] %s21
      %s23 = sshll.u32 [#allocation3], 4
      %s24 = int_to_ptr.vmem [resolvable:$true] %s23
      %26 = dma.hbm_to_vmem [thread:$0]  %s22, 128, %s24, [#allocation4]
    $region5: #{tpu_custom_call.1} parent=1 // pred_fallthru
      _
    // Predicated region
    $region6: #{tpu_custom_call.1} parent=1 // pred_check
      _
    $region7: #{tpu_custom_call.1} parent=1 // pred_check_branch
      %28 = sbr.rel (0) target = $region9
    $region8: #{tpu_custom_call.1} parent=1 // pred_region
      %30 = vsyncadd [#allocation7], 0
      %s31 = sshll.u32 %s1, 4
      %s32 = int_to_ptr.hbm [resolvable:$true] %s31
      %s33 = sshll.u32 [#allocation6], 4
      %s34 = int_to_ptr.vmem [resolvable:$true] %s33
      %39 = dma.hbm_to_vmem [thread:$0]  %s32, 2048, %s34, [#allocation7], 128, 128, 8
    $region9: #{tpu_custom_call.1} parent=1 // pred_fallthru
      _
    // Predicated region
    $region10: #{tpu_custom_call.1} parent=1 // pred_check
      _
    $region11: #{tpu_custom_call.1} parent=1 // pred_check_branch
      %41 = sbr.rel (0) target = $region13
    $region12: #{tpu_custom_call.1} parent=1 // pred_region
      %43 = vsyncadd [#allocation7], 0
      %s44 = sshll.u32 %s2, 4
      %s45 = int_to_ptr.hbm [resolvable:$true] %s44
      %s46 = sshll.u32 [#allocation8], 4
      %s47 = int_to_ptr.vmem [resolvable:$true] %s46
      %52 = dma.hbm_to_vmem [thread:$0]  %s45, 2048, %s47, [#allocation7], 128, 128, 8
    $region13: #{tpu_custom_call.1} parent=1 // pred_fallthru
      _
    // Predicated region
    $region14: #{tpu_custom_call.1} parent=1 // pred_check
      _
    $region15: #{tpu_custom_call.1} parent=1 // pred_check_branch
      %54 = sbr.rel (0) target = $region17
    $region16: #{tpu_custom_call.1} parent=1 // pred_region
      %56 = vsyncadd [#allocation10], 0
      %s57 = sshll.u32 %s3, 4
      %s58 = int_to_ptr.hbm [resolvable:$true] %s57
      %s59 = sshll.u32 [#allocation9], 4
      %s60 = int_to_ptr.vmem [resolvable:$true] %s59
      %65 = dma.hbm_to_vmem [thread:$0]  %s58, 2048, %s60, [#allocation10], 128, 128, 8
    $region17: #{tpu_custom_call.1} parent=1 // pred_fallthru
      _
    // Predicated region
    $region18: #{tpu_custom_call.1} parent=1 // pred_check
      _
    $region19: #{tpu_custom_call.1} parent=1 // pred_check_branch
      %67 = sbr.rel (0) target = $region21
    $region20: #{tpu_custom_call.1} parent=1 // pred_region
      _
    $region21: #{tpu_custom_call.1} parent=1 // pred_fallthru
      _
    // Predicated region
    $region22: #{tpu_custom_call.1} parent=1 // pred_check
      _
    $region23: #{tpu_custom_call.1} parent=1 // pred_check_branch
      %69 = sbr.rel (0) target = $region25
    $region24: #{tpu_custom_call.1} parent=1 // pred_region
      _
    $region25: #{tpu_custom_call.1} parent=1 // pred_fallthru
      _
    // Predicated region
    $region26: #{tpu_custom_call.1} parent=1 // pred_check
      _
    $region27: #{tpu_custom_call.1} parent=1 // pred_check_branch
      %71 = sbr.rel (0) target = $region29
    $region28: #{tpu_custom_call.1} parent=1 // pred_region
      _
    $region29: #{tpu_custom_call.1} parent=1 // pred_fallthru
      _
    // Predicated region
    $region30: #{tpu_custom_call.1} parent=1 // pred_check
      _
    $region31: #{tpu_custom_call.1} parent=1 // pred_check_branch
      %73 = sbr.rel (0) target = $region33
    $region32: #{tpu_custom_call.1} parent=1 // pred_region
      %75 = dma.done [#allocation4], 128
    $region33: #{tpu_custom_call.1} parent=1 // pred_fallthru
      _
    // Predicated region
    $region34: #{tpu_custom_call.1} parent=1 // pred_check
      _
    $region35: #{tpu_custom_call.1} parent=1 // pred_check_branch
      %77 = sbr.rel (0) target = $region37
    $region36: #{tpu_custom_call.1} parent=1 // pred_region
      %79 = dma.done [#allocation7], 2048
    $region37: #{tpu_custom_call.1} parent=1 // pred_fallthru
      _
    // Predicated region
    $region38: #{tpu_custom_call.1} parent=1 // pred_check
      _
    $region39: #{tpu_custom_call.1} parent=1 // pred_check_branch
      %81 = sbr.rel (0) target = $region41
    $region40: #{tpu_custom_call.1} parent=1 // pred_region
      %83 = dma.done [#allocation7], 2048
    $region41: #{tpu_custom_call.1} parent=1 // pred_fallthru
      _
    // Predicated region
    $region42: #{tpu_custom_call.1} parent=1 // pred_check
      _
    $region43: #{tpu_custom_call.1} parent=1 // pred_check_branch
      %85 = sbr.rel (0) target = $region45
    $region44: #{tpu_custom_call.1} parent=1 // pred_region
      %87 = dma.done [#allocation10], 2048
    $region45: #{tpu_custom_call.1} parent=1 // pred_fallthru
      _
    %p88 = scmp.eq.s32.totalorder 0, 0
    // Predicated region
    $region46: #{tpu_custom_call.1} parent=1 // pred_check
      %p89 = pneg %p88
    $region47: #{tpu_custom_call.1} parent=1 // pred_check_branch
      %91 = sbr.rel (%p89) target = $region49
    $region48: #{tpu_custom_call.1} parent=1 // pred_region
      %92 = vst [vmem:[#allocation2] sm:$0xff] 0.0
    $region49: #{tpu_custom_call.1} parent=1 // pred_fallthru
      _
    %v93 = vld [vmem:[#allocation6] sm:$0xff]
    %v94 = vld [vmem:[#allocation6 + $0x8] sm:$0xff]
    %v95 = vld [vmem:[#allocation6 + $0x10] sm:$0xff]
    %v96 = vld [vmem:[#allocation6 + $0x18] sm:$0xff]
    %v97 = vld [vmem:[#allocation6 + $0x20] sm:$0xff]
    %v98 = vld [vmem:[#allocation6 + $0x28] sm:$0xff]
    %v99 = vld [vmem:[#allocation6 + $0x30] sm:$0xff]
    %v100 = vld [vmem:[#allocation6 + $0x38] sm:$0xff]
    %v101 = vld [vmem:[#allocation6 + $0x40] sm:$0xff]
    %v102 = vld [vmem:[#allocation6 + $0x48] sm:$0xff]
    %v103 = vld [vmem:[#allocation6 + $0x50] sm:$0xff]
    %v104 = vld [vmem:[#allocation6 + $0x58] sm:$0xff]
    %v105 = vld [vmem:[#allocation6 + $0x60] sm:$0xff]
    %v106 = vld [vmem:[#allocation6 + $0x68] sm:$0xff]
    %v107 = vld [vmem:[#allocation6 + $0x70] sm:$0xff]
    %v108 = vld [vmem:[#allocation6 + $0x78] sm:$0xff]
    %v109 = vld [vmem:[#allocation8] sm:$0xff]
    %v110 = vld [vmem:[#allocation8 + $0x8] sm:$0xff]
    %v111 = vld [vmem:[#allocation8 + $0x10] sm:$0xff]
    %v112 = vld [vmem:[#allocation8 + $0x18] sm:$0xff]
    %v113 = vld [vmem:[#allocation8 + $0x20] sm:$0xff]
    %v114 = vld [vmem:[#allocation8 + $0x28] sm:$0xff]
    %v115 = vld [vmem:[#allocation8 + $0x30] sm:$0xff]
    %v116 = vld [vmem:[#allocation8 + $0x38] sm:$0xff]
    %v117 = vld [vmem:[#allocation8 + $0x40] sm:$0xff]
    %v118 = vld [vmem:[#allocation8 + $0x48] sm:$0xff]
    %v119 = vld [vmem:[#allocation8 + $0x50] sm:$0xff]
    %v120 = vld [vmem:[#allocation8 + $0x58] sm:$0xff]
    %v121 = vld [vmem:[#allocation8 + $0x60] sm:$0xff]
    %v122 = vld [vmem:[#allocation8 + $0x68] sm:$0xff]
    %v123 = vld [vmem:[#allocation8 + $0x70] sm:$0xff]
    %v124 = vld [vmem:[#allocation8 + $0x78] sm:$0xff]
    %v125 = vmul.f32 %v109, 1.442695
    %v126 = vpow.pop %v125
    %v127 = vmul.f32 %v110, 1.442695
    %v128 = vpow.pop %v127
    %v129 = vmul.f32 %v111, 1.442695
    %v130 = vpow.pop %v129
    %v131 = vmul.f32 %v112, 1.442695
    %v132 = vpow.pop %v131
    %v133 = vmul.f32 %v113, 1.442695
    %v134 = vpow.pop %v133
    %v135 = vmul.f32 %v114, 1.442695
    %v136 = vpow.pop %v135
    %v137 = vmul.f32 %v115, 1.442695
    %v138 = vpow.pop %v137
    %v139 = vmul.f32 %v116, 1.442695
    %v140 = vpow.pop %v139
    %v141 = vmul.f32 %v117, 1.442695
    %v142 = vpow.pop %v141
    %v143 = vmul.f32 %v118, 1.442695
    %v144 = vpow.pop %v143
    %v145 = vmul.f32 %v119, 1.442695
    %v146 = vpow.pop %v145
    %v147 = vmul.f32 %v120, 1.442695
    %v148 = vpow.pop %v147
    %v149 = vmul.f32 %v121, 1.442695
    %v150 = vpow.pop %v149
    %v151 = vmul.f32 %v122, 1.442695
    %v152 = vpow.pop %v151
    %v153 = vmul.f32 %v123, 1.442695
    %v154 = vpow.pop %v153
    %v155 = vmul.f32 %v124, 1.442695
    %v156 = vpow.pop %v155
    %v157 = vld [vmem:[#allocation9] sm:$0xff]
    %v158 = vld [vmem:[#allocation9 + $0x8] sm:$0xff]
    %v159 = vld [vmem:[#allocation9 + $0x10] sm:$0xff]
    %v160 = vld [vmem:[#allocation9 + $0x18] sm:$0xff]
    %v161 = vld [vmem:[#allocation9 + $0x20] sm:$0xff]
    %v162 = vld [vmem:[#allocation9 + $0x28] sm:$0xff]
    %v163 = vld [vmem:[#allocation9 + $0x30] sm:$0xff]
    %v164 = vld [vmem:[#allocation9 + $0x38] sm:$0xff]
    %v165 = vld [vmem:[#allocation9 + $0x40] sm:$0xff]
    %v166 = vld [vmem:[#allocation9 + $0x48] sm:$0xff]
    %v167 = vld [vmem:[#allocation9 + $0x50] sm:$0xff]
    %v168 = vld [vmem:[#allocation9 + $0x58] sm:$0xff]
    %v169 = vld [vmem:[#allocation9 + $0x60] sm:$0xff]
    %v170 = vld [vmem:[#allocation9 + $0x68] sm:$0xff]
    %v171 = vld [vmem:[#allocation9 + $0x70] sm:$0xff]
    %v172 = vld [vmem:[#allocation9 + $0x78] sm:$0xff]
    %v173 = vmul.f32 %v126, %v157
    %v174 = vmul.f32 %v128, %v158
    %v175 = vmul.f32 %v130, %v159
    %v176 = vmul.f32 %v132, %v160
    %v177 = vmul.f32 %v134, %v161
    %v178 = vmul.f32 %v136, %v162
    %v179 = vmul.f32 %v138, %v163
    %v180 = vmul.f32 %v140, %v164
    %v181 = vmul.f32 %v142, %v165
    %v182 = vmul.f32 %v144, %v166
    %v183 = vmul.f32 %v146, %v167
    %v184 = vmul.f32 %v148, %v168
    %v185 = vmul.f32 %v150, %v169
    %v186 = vmul.f32 %v152, %v170
    %v187 = vmul.f32 %v154, %v171
    %v188 = vmul.f32 %v156, %v172
    %v189 = vadd.f32 %v93, %v173
    %v190 = vadd.f32 %v94, %v174
    %v191 = vadd.f32 %v95, %v175
    %v192 = vadd.f32 %v96, %v176
    %v193 = vadd.f32 %v97, %v177
    %v194 = vadd.f32 %v98, %v178
    %v195 = vadd.f32 %v99, %v179
    %v196 = vadd.f32 %v100, %v180
    %v197 = vadd.f32 %v101, %v181
    %v198 = vadd.f32 %v102, %v182
    %v199 = vadd.f32 %v103, %v183
    %v200 = vadd.f32 %v104, %v184
    %v201 = vadd.f32 %v105, %v185
    %v202 = vadd.f32 %v106, %v186
    %v203 = vadd.f32 %v107, %v187
    %v204 = vadd.f32 %v108, %v188
    %v205 = vld [vmem:[#allocation2] sm:$0xff]
    %v206 = vld [vmem:[#allocation3] sm:$0xff]
    %207 = vmatpush.xpose.msra.mxu0 %v204
    %208 = vmatpush.xpose.msra.mxu0 %v203
    %209 = vmatpush.xpose.msra.mxu0 %v202
    %210 = vmatpush.xpose.msra.mxu0 %v201
    %211 = vmatpush.xpose.msra.mxu0 %v200
    %212 = vmatpush.xpose.msra.mxu0 %v199
    %213 = vmatpush.xpose.msra.mxu0 %v198
    %214 = vmatpush.xpose.msra.mxu0 %v197
    %215 = vmatpush.xpose.msra.mxu0 %v196
    %216 = vmatpush.xpose.msra.mxu0 %v195
    %217 = vmatpush.xpose.msra.mxu0 %v194
    %218 = vmatpush.xpose.msra.mxu0 %v193
    %219 = vmatpush.xpose.msra.mxu0 %v192
    %220 = vmatpush.xpose.msra.mxu0 %v191
    %221 = vmatpush.xpose.msra.mxu0 %v190
    %222 = vmatpush.xpose.msra.mxu0 %v189
    %223 = vmatmul.f32.gmra.mxu0 %v206
    %v224 = vpop.f32.mrf.mxu0
    %v225 = vadd.f32 0.0, %v224
    %226 = vdwg.mxu0
    %v227 = vadd.f32 %v205, %v225
    %228 = vst [vmem:[#allocation2] sm:$0xff] %v227
    // Predicated region
    $region50: #{tpu_custom_call.1} parent=1 // pred_check
      %p229 = pneg %p88
    $region51: #{tpu_custom_call.1} parent=1 // pred_check_branch
      %231 = sbr.rel (%p229) target = $region53
    $region52: #{tpu_custom_call.1} parent=1 // pred_region
      %v232 = vld [vmem:[%s4] sm:$0x1]
      %v233 = vld [vmem:[%s5] sm:$0x1]
      %v234 = vmul.f32 %v233, 1.442695
      %v235 = vpow.pop %v234
      %v236 = vld [vmem:[%s6] sm:$0x1]
      %v237 = vmul.f32 %v235, %v236
      %v238 = vadd.f32 %v232, %v237
      %v239 = vld [vmem:[#allocation2] sm:$0xff]
      %v241 = vperm.slane %v238, 0
      %v243 = vadd.f32 %v239, %v241
      %244 = vst [vmem:[#allocation11] sm:$0xff] %v243
    $region53: #{tpu_custom_call.1} parent=1 // pred_fallthru
      _
    // Predicated region
    $region54: #{tpu_custom_call.1} parent=1 // pred_check
      _
    $region55: #{tpu_custom_call.1} parent=1 // pred_check_branch
      %246 = sbr.rel (0) target = $region57
    $region56: #{tpu_custom_call.1} parent=1 // pred_region
      %248 = vsyncadd [#allocation5], 0
      %s250 = sshll.u32 [#allocation11], 4
      %s251 = int_to_ptr.vmem [resolvable:$true] %s250
      %s252 = sshll.u32 %s7, 4
      %s253 = int_to_ptr.hbm [resolvable:$true] %s252
      %255 = dma.vmem_to_hbm [thread:$0]  %s251, 128, %s253, [#allocation5]
    $region57: #{tpu_custom_call.1} parent=1 // pred_fallthru
      _
    // Predicated region
    $region58: #{tpu_custom_call.1} parent=1 // pred_check
      _
    $region59: #{tpu_custom_call.1} parent=1 // pred_check_branch
      %257 = sbr.rel (0) target = $region61
    $region60: #{tpu_custom_call.1} parent=1 // pred_region
      %259 = dma.done [#allocation5], 128
    $region61: #{tpu_custom_call.1} parent=1 // pred_fallthru
      _
    %260 = vsyncpa [#allocation4], 1
    %261 = vsyncpa [#allocation7], 1
    %262 = vsyncpa [#allocation10], 1
    %263 = vsyncpa [#allocation5], 1

</llo_original>
